<compile_context>
chip_gen: v7x
topology: tpu7x:2x2x1
jax: 0.10.0
libtpu: 0.0.40
codegen_flags: <defaults>
</compile_context>

<pallas_src>
import functools
import math

import jax
import jax.numpy as jnp
from jax.experimental import pallas as pl
from jax.experimental.pallas import tpu as pltpu


def _round_up(v, m):
    return ((v + m - 1) // m) * m


@functools.lru_cache(maxsize=1)
def _tpu_caps():
    """Returns (is_v7x, vmem_budget_bytes); conservative if detection fails."""
    kind = ""
    try:
        kind = jax.devices()[0].device_kind.lower()
    except Exception:
        pass
    is_v7x = "v7" in kind
    big_vmem_gen = any(t in kind for t in ("v4", "v5", "v6"))
    # Usable budget for this kernel's double-buffered in/out blocks + f32 temps:
    # 128 MiB physical on v4/v5e/v6e, 64 MiB per TensorCore on v7x (assume the
    # small-VMEM case when the generation cannot be identified).
    budget = (80 if (big_vmem_gen and not is_v7x) else 40) * 1024 * 1024
    try:
        phys = int(getattr(pltpu.get_tpu_info(), "vmem_capacity_bytes", 0))
        if phys > 0:
            budget = min(budget, int(phys * 0.65))
    except Exception:
        pass
    return is_v7x, budget


def _vmem_limit_bytes(needed, is_v7x):
    """Scoped-VMEM request derived from actual buffer math + Mosaic margin."""
    cap = (56 if is_v7x else 100) * 1024 * 1024
    return int(min(max(needed + 8 * 1024 * 1024, 32 * 1024 * 1024), cap))


def _even_steps(n, tile, step):
    """Best-effort shrink of `tile` (granularity `step`, not below tile//2) so
    cdiv(n, tile) is even -> both v7x TensorCores stay busy on small grids."""
    cand = tile
    lo = max(step, tile // 2)
    while cand >= lo:
        if pl.cdiv(n, cand) % 2 == 0:
            return cand
        cand -= step
    return tile


def _choose_tm(num_rows, d, in_item, out_item, is_v7x, vmem_budget):
    """Row tile for the lane-dim kernel. Caller guarantees num_rows >= 8.
    Returns 0 if even an 8-row tile does not fit VMEM (caller falls back)."""
    # VMEM per tile row: double-buffered input + output blocks + ~2 f32 temps.
    per_row = d * (2 * in_item + 2 * out_item + 8)
    if 8 * per_row > vmem_budget:
        return 0
    # Input-DMA chunk at/above the HBM-roofline knee (~2-4 MiB); bigger on v7x
    # where the ~0.35 us/step fixed overhead is relatively larger at 3.2 TB/s.
    target_in_bytes = (6 if is_v7x else 3) * 1024 * 1024
    tm = min(target_in_bytes // (d * in_item), vmem_budget // per_row)
    tm = max(8, (tm // 8) * 8)
    tm = min(tm, (num_rows // 8) * 8)  # last grid block may be partial
    if is_v7x:
        if num_rows > tm:
            tm = _even_steps(num_rows, tm, 8)
        elif num_rows >= 16:
            # Whole tensor fits one tile: split into 2 steps so both TCs work.
            tm = min((num_rows // 8) * 8, _round_up(pl.cdiv(num_rows, 2), 8))
    return tm


def _choose_tb(num_b, s_len, lanes, in_item, out_item, is_v7x, vmem_budget):
    """Leading-dim tile for the sublane (dim=-2) kernel; 0 => does not fit."""
    per_b = s_len * lanes * (2 * in_item + 2 * out_item + 8)
    if per_b > vmem_budget:
        return 0
    target_in_bytes = (6 if is_v7x else 3) * 1024 * 1024
    tb = max(1, min(target_in_bytes // (s_len * lanes * in_item),
                    vmem_budget // per_b))
    tb = min(tb, num_b)
    if is_v7x:
        if num_b > tb:
            tb = _even_steps(num_b, tb, 1)
        elif num_b >= 2:
            tb = pl.cdiv(num_b, 2)
    return tb


def _softmax_lastdim_kernel(x_ref, o_ref):
    # (TM, D) tile; numerically stable softmax along the lane (last) axis.
    # The torch `dtype=` input cast is fused here (upcast to f32 regardless).
    # Rows of a partial last grid block hold unspecified data, so exp() there
    # may produce inf/NaN — those rows never reach HBM output; do NOT "fix"
    # this by reading the padded output region.
    x = x_ref[...].astype(jnp.float32)
    m = jnp.max(x, axis=-1, keepdims=True)
    e = jnp.exp(x - m)
    s = jnp.sum(e, axis=-1, keepdims=True)
    # EUP approximate reciprocal (free slot; kernel is HBM-bound) + one Newton
    # step to recover ~f32-tight accuracy.
    inv = pl.reciprocal(s, approx=True)
    inv = inv * (2.0 - s * inv)
    o_ref[...] = (e * inv).astype(o_ref.dtype)
    # TODO(synk): for very long rows (D >~ 16K f32) an online lane-chunk loop
    # would avoid holding the full (TM, D) f32 intermediate (matters on v7x).


def _softmax_sublane_kernel(x_ref, o_ref):
    # (TB, S, D) tile; softmax along axis=-2 (XLU sublane reductions) with the
    # original last dim kept lane-dense — avoids the two full-tensor HBM
    # transposes that a moveaxis-to-last layout would imply.
    x = x_ref[...].astype(jnp.float32)
    m = jnp.max(x, axis=-2, keepdims=True)
    e = jnp.exp(x - m)
    s = jnp.sum(e, axis=-2, keepdims=True)
    inv = pl.reciprocal(s, approx=True)
    inv = inv * (2.0 - s * inv)
    o_ref[...] = (e * inv).astype(o_ref.dtype)


def _softmax_lastdim(x2d, out_dtype, tm, vmem_limit):
    rows, d = x2d.shape
    return pl.pallas_call(
        _softmax_lastdim_kernel,
        out_shape=jax.ShapeDtypeStruct((rows, d), out_dtype),
        grid_spec=pltpu.PrefetchScalarGridSpec(
            num_scalar_prefetch=0,
            grid=(pl.cdiv(rows, tm),),
            in_specs=[pl.BlockSpec((tm, d), lambda i: (i, 0))],
            out_specs=pl.BlockSpec((tm, d), lambda i: (i, 0)),
        ),
        compiler_params=pltpu.CompilerParams(
            dimension_semantics=("parallel",),
            vmem_limit_bytes=vmem_limit,
        ),
    )(x2d)


def _softmax_sublane(x3d, out_dtype, tb, vmem_limit):
    nb, s_len, lanes = x3d.shape
    return pl.pallas_call(
        _softmax_sublane_kernel,
        out_shape=jax.ShapeDtypeStruct((nb, s_len, lanes), out_dtype),
        grid_spec=pltpu.PrefetchScalarGridSpec(
            num_scalar_prefetch=0,
            grid=(pl.cdiv(nb, tb),),
            in_specs=[pl.BlockSpec((tb, s_len, lanes), lambda i: (i, 0, 0))],
            out_specs=pl.BlockSpec((tb, s_len, lanes), lambda i: (i, 0, 0)),
        ),
        compiler_params=pltpu.CompilerParams(
            dimension_semantics=("parallel",),
            vmem_limit_bytes=vmem_limit,
        ),
    )(x3d)


class LlmcSoftmax:
    """JAX/Pallas port of llmc's LlmcSoftmax (quant path a_qdq disabled)."""

    def __init__(self, a_qdq=None):
        self.a_qdq = a_qdq
        self.calib = True

    def __call__(self, x, dim=-1, dtype=None):
        if self.a_qdq is not None and (not self.calib):
            # TODO(synk): a_qdq fake-quant hook only fires when calib=False; not ported.
            x = self.a_qdq(x, self)

        out_dtype = jnp.dtype(dtype) if dtype is not None else jnp.dtype(x.dtype)
        # torch.softmax(dtype=d) casts the *input* to d and computes in d.  The
        # cast is fused into the kernel (which upcasts to f32 internally), so
        # there is no extra HBM pass; computing in f32 is a deliberate,
        # more-accurate deviation from strict torch reduced-precision semantics.

        ndim = x.ndim
        axis = dim % ndim
        d = x.shape[axis]
        is_v7x, vmem_budget = _tpu_caps()
        in_item = jnp.dtype(x.dtype).itemsize
        out_item = out_dtype.itemsize

        def _xla_fallback():
            return jax.nn.softmax(x.astype(jnp.float32), axis=axis).astype(out_dtype)

        if axis == ndim - 1:
            lead_shape = x.shape[:-1]
            rows = math.prod(lead_shape) if lead_shape else 1
            # <128 lanes => masked vst + >50% lane waste; rows<8 is degenerate.
            # TODO(synk): verify on a bundle dump whether D == 128 is
            # XLU-reduction-bound on v6e/v7x and should also take the fallback.
            if d < 128 or rows < 8:
                return _xla_fallback()
            tm = _choose_tm(rows, d, in_item, out_item, is_v7x, vmem_budget)
            if tm == 0:  # row too wide even for an 8-row tile
                return _xla_fallback()
            x2d = x.reshape((rows, d))
            needed = tm * d * (2 * in_item + 2 * out_item + 8)
            out2d = _softmax_lastdim(x2d, out_dtype, tm,
                                     _vmem_limit_bytes(needed, is_v7x))
            return out2d.reshape(lead_shape + (d,))

        if axis == ndim - 2 and x.shape[-1] >= 128:
            # Softmax over the second-to-last axis: sublane-reduction kernel,
            # last dim stays lane-dense -> no moveaxis / extra HBM transposes.
            lanes = x.shape[-1]
            lead_shape = x.shape[:-2]
            nb = math.prod(lead_shape) if lead_shape else 1
            tb = _choose_tb(nb, d, lanes, in_item, out_item, is_v7x, vmem_budget)
            if tb > 0:
                x3d = x.reshape((nb, d, lanes))
                needed = tb * d * lanes * (2 * in_item + 2 * out_item + 8)
                out3d = _softmax_sublane(x3d, out_dtype, tb,
                                         _vmem_limit_bytes(needed, is_v7x))
                return out3d.reshape(lead_shape + (d, lanes))
            # (S, D) slab too large for one VMEM block -> fall through.

        # General non-last dim: narrow softmax widths go straight to XLA; wide
        # ones pay the moveaxis (two HBM transposes) and reuse the lane kernel.
        if d < 128:
            return _xla_fallback()
        xm = jnp.moveaxis(x, axis, -1)
        lead_shape = xm.shape[:-1]
        rows = math.prod(lead_shape) if lead_shape else 1
        if rows < 8:
            return _xla_fallback()
        tm = _choose_tm(rows, d, in_item, out_item, is_v7x, vmem_budget)
        if tm == 0:
            return _xla_fallback()
        x2d = xm.reshape((rows, d))
        needed = tm * d * (2 * in_item + 2 * out_item + 8)
        out2d = _softmax_lastdim(x2d, out_dtype, tm,
                                 _vmem_limit_bytes(needed, is_v7x))
        out = out2d.reshape(lead_shape + (d,))
        return jnp.moveaxis(out, -1, axis)

    def __repr__(self):
        return f"LlmcSoftmax(calib={self.calib})"


if __name__ == "__main__":
    key = jax.random.PRNGKey(0)
    mod = LlmcSoftmax()

    # Attention-score-like input with lane-dense softmax width (lane kernel path).
    x = jax.random.normal(key, (2, 4, 8, 256), dtype=jnp.float32)
    out = jax.block_until_ready(mod(x, dim=-1, dtype=None))
    ref = jax.nn.softmax(x.astype(jnp.float32), axis=-1).astype(x.dtype)
    assert out.shape == x.shape and out.dtype == x.dtype
    assert jnp.allclose(out, ref, atol=1e-5, rtol=1e-5)

    # bf16 in / bf16 out through the kernel path (itemsize-aware tiling).
    xb = x.astype(jnp.bfloat16)
    outb = jax.block_until_ready(mod(xb, dim=-1, dtype=None))
    refb = jax.nn.softmax(xb.astype(jnp.float32), axis=-1).astype(jnp.bfloat16)
    assert outb.shape == xb.shape and outb.dtype == jnp.bfloat16
    assert jnp.allclose(outb.astype(jnp.float32), refb.astype(jnp.float32),
                        atol=2e-2, rtol=2e-2)

    # dtype argument (torch semantics: cast folded into the kernel, output bf16).
    outd = jax.block_until_ready(mod(x, dim=-1, dtype=jnp.bfloat16))
    assert outd.dtype == jnp.bfloat16
    refd = jax.nn.softmax(x.astype(jnp.float32), axis=-1).astype(jnp.bfloat16)
    assert jnp.allclose(outd.astype(jnp.float32), refd.astype(jnp.float32),
                        atol=2e-2, rtol=2e-2)

    # Tiny softmax width (32 lanes) -> XLA fallback path.
    xs = jax.random.normal(jax.random.PRNGKey(1), (2, 4, 8, 32), dtype=jnp.float32)
    outs = jax.block_until_ready(mod(xs, dim=-1))
    refs = jax.nn.softmax(xs, axis=-1)
    assert jnp.allclose(outs, refs, atol=1e-5, rtol=1e-5)

    # dim = -2 -> sublane-reduction kernel (no moveaxis / HBM transposes).
    x2 = jax.random.normal(jax.random.PRNGKey(3), (2, 4, 64, 256), dtype=jnp.float32)
    out2 = jax.block_until_ready(mod(x2, dim=-2))
    ref2 = jax.nn.softmax(x2, axis=-2)
    assert out2.shape == x2.shape
    assert jnp.allclose(out2, ref2, atol=1e-5, rtol=1e-5)

    # Non-last, non--2 softmax dim (exercises the moveaxis glue path).
    xl = jax.random.normal(jax.random.PRNGKey(2), (2, 128, 8, 4), dtype=jnp.float32)
    outl = jax.block_until_ready(mod(xl, dim=1))
    refl = jax.nn.softmax(xl, axis=1)
    assert jnp.allclose(outl, refl, atol=1e-5, rtol=1e-5)

    print("KERNEL_OK")
</pallas_src>

<mosaic_0001>
module attributes {stable_mosaic.version = 11 : i64} {
  func.func @_softmax_lastdim_kernel(%arg0: i32, %arg1: memref<64x256xf32, #tpu.memory_space<vmem>>, %arg2: memref<64x256xf32, #tpu.memory_space<vmem>>) attributes {dimension_semantics = [#tpu.dimension_semantics<parallel>], iteration_bounds = array<i64: 1>, scalar_prefetch = 0 : i64, scratch_operands = 0 : i64, tpu.core_type = #tpu.core_type<tc>, window_params = [{transform_indices = @transform_0, window_bounds = array<i64: 64, 256>}, {transform_indices = @transform_1, window_bounds = array<i64: 64, 256>}]} {
    %c0 = arith.constant 0 : index
    %c0_0 = arith.constant 0 : index
    %0 = vector.load %arg1[%c0, %c0_0] : memref<64x256xf32, #tpu.memory_space<vmem>>, vector<64x256xf32>
    %cst = arith.constant dense<0xFF800000> : vector<64xf32>
    %1 = vector.multi_reduction <maximumf>, %0, %cst [1] : vector<64x256xf32> to vector<64xf32>
    %2 = vector.shape_cast %1 : vector<64xf32> to vector<64x1xf32>
    %3 = vector.broadcast %2 : vector<64x1xf32> to vector<64x256xf32>
    %4 = arith.subf %0, %3 : vector<64x256xf32>
    %5 = math.exp %4 : vector<64x256xf32>
    %cst_1 = arith.constant dense<0.000000e+00> : vector<64xf32>
    %6 = vector.multi_reduction <add>, %5, %cst_1 [1] : vector<64x256xf32> to vector<64xf32>
    %7 = vector.shape_cast %6 : vector<64xf32> to vector<64x1xf32>
    %8 = tpu.reciprocal %7 {approx = true} : vector<64x1xf32> -> vector<64x1xf32>
    %9 = arith.mulf %7, %8 : vector<64x1xf32>
    %cst_2 = arith.constant 2.000000e+00 : f32
    %10 = vector.broadcast %cst_2 : f32 to vector<64x1xf32>
    %11 = arith.subf %10, %9 : vector<64x1xf32>
    %12 = arith.mulf %8, %11 : vector<64x1xf32>
    %13 = vector.broadcast %12 : vector<64x1xf32> to vector<64x256xf32>
    %14 = arith.mulf %5, %13 : vector<64x256xf32>
    %c0_3 = arith.constant 0 : index
    %c0_4 = arith.constant 0 : index
    %15 = vector.load %arg2[%c0_3, %c0_4] : memref<64x256xf32, #tpu.memory_space<vmem>>, vector<64x256xf32>
    tpu.vector_store %arg2[%c0_3, %c0_4], %14 {strides = array<i32>} : memref<64x256xf32, #tpu.memory_space<vmem>>, vector<64x256xf32>,
    return
  }
  func.func @transform_0(%arg0: i32) -> (i32, i32) {
    %c0_i32 = arith.constant 0 : i32
    %c0_i32_0 = arith.constant 0 : i32
    return %arg0, %c0_i32 : i32, i32
  }
  func.func @transform_1(%arg0: i32) -> (i32, i32) {
    %c0_i32 = arith.constant 0 : i32
    %c0_i32_0 = arith.constant 0 : i32
    return %arg0, %c0_i32 : i32, i32
  }
}

</mosaic_0001>

<llo_original>
// kernel: tpu_custom_call.1
$region0: #{tpu_custom_call.1}
  #allocation0 [shape = 'u32[]', space=smem, size = 0x4, offset = 0x4, fixed_abs, tag = 'smem constant byte address 0x4 - core index']
  #allocation1 [shape = 'u32[144,128]{1,0:T(1,128)}', space=vmem, size = 0x12000, scoped, tag = 'internal scratch']
  %s0 = inlined_call_operand.hbm [shape: f32[64,256], index: 0, kind: input, shape index: {}]
  %s1 = inlined_call_operand.hbm [shape: f32[64,256], index: 1, kind: output, shape index: {}]
  %s2 = sld [smem:[#allocation0]]
  $region18: #{tpu_custom_call.1} parent=0
    _
  %s4 = ssub.s32 1, %s2
  %s5 = scalar_select 0, %s4, %s2
  $region1: #{tpu_custom_call.1} parent=0
    #allocation2 [shape = 'u8[65536]{0}', space=vmem, size = 0x10000, scoped, tag = 'input window, operand 0, single buffered']
    #allocation3 [shape = 's32[1]{0}', space=sflag, size = 0x4, scoped, tag = 'scoped memory for tpu_custom_call.1']
    #allocation4 [shape = 's32[1]{0}', space=sflag, size = 0x4, scoped, tag = 'scoped memory for tpu_custom_call.1']
    #allocation5 [shape = 'u8[65536]{0}', space=vmem, size = 0x10000, scoped, tag = 'output window, operand 0, single buffered']
    %6 = vsyncpa [#allocation3], 0
    %7 = vsyncpa [#allocation4], 0
    // Predicated region
    $region2: #{tpu_custom_call.1} parent=1 // pred_check
      _
    $region3: #{tpu_custom_call.1} parent=1 // pred_check_branch
      %9 = sbr.rel (0) target = $region5
    $region4: #{tpu_custom_call.1} parent=1 // pred_region
      %s11 = ssub.s32 2048, 2048
      %12 = vsyncadd [#allocation3], %s11
      %s13 = sshll.u32 [#allocation2], 4
      %s14 = int_to_ptr.vmem [resolvable:$true] %s13
      %19 = dma.hbm_to_vmem [thread:$0]  %s0, 2048, %s14, [#allocation3], 256, 256, 16
    $region5: #{tpu_custom_call.1} parent=1 // pred_fallthru
      _
    // Predicated region
    $region6: #{tpu_custom_call.1} parent=1 // pred_check
      _
    $region7: #{tpu_custom_call.1} parent=1 // pred_check_branch
      %21 = sbr.rel (0) target = $region9
    $region8: #{tpu_custom_call.1} parent=1 // pred_region
      %22 = dma.done [#allocation3], 2048
    $region9: #{tpu_custom_call.1} parent=1 // pred_fallthru
      _
    %v23 = vld [vmem:[#allocation2] sm:$0xff]
    %v24 = vld [vmem:[#allocation2 + $0x8] sm:$0xff]
    %v25 = vld [vmem:[#allocation2 + $0x10] sm:$0xff]
    %v26 = vld [vmem:[#allocation2 + $0x18] sm:$0xff]
    %v27 = vld [vmem:[#allocation2 + $0x20] sm:$0xff]
    %v28 = vld [vmem:[#allocation2 + $0x28] sm:$0xff]
    %v29 = vld [vmem:[#allocation2 + $0x30] sm:$0xff]
    %v30 = vld [vmem:[#allocation2 + $0x38] sm:$0xff]
    %v31 = vld [vmem:[#allocation2 + $0x40] sm:$0xff]
    %v32 = vld [vmem:[#allocation2 + $0x48] sm:$0xff]
    %v33 = vld [vmem:[#allocation2 + $0x50] sm:$0xff]
    %v34 = vld [vmem:[#allocation2 + $0x58] sm:$0xff]
    %v35 = vld [vmem:[#allocation2 + $0x60] sm:$0xff]
    %v36 = vld [vmem:[#allocation2 + $0x68] sm:$0xff]
    %v37 = vld [vmem:[#allocation2 + $0x70] sm:$0xff]
    %v38 = vld [vmem:[#allocation2 + $0x78] sm:$0xff]
    %v39 = vmax.f32 %v23, %v24
    %40 = vmax.xlane.f32.xlu0 %v39
    %v41 = vpop.xlane.xlu0 %40
    %v42 = vmax.f32 %v25, %v26
    %43 = vmax.xlane.f32.xlu0 %v42
    %v44 = vpop.xlane.xlu0 %43
    %v45 = vmax.f32 %v27, %v28
    %46 = vmax.xlane.f32.xlu0 %v45
    %v47 = vpop.xlane.xlu0 %46
    %v48 = vmax.f32 %v29, %v30
    %49 = vmax.xlane.f32.xlu0 %v48
    %v50 = vpop.xlane.xlu0 %49
    %v51 = vmax.f32 %v31, %v32
    %52 = vmax.xlane.f32.xlu0 %v51
    %v53 = vpop.xlane.xlu0 %52
    %v54 = vmax.f32 %v33, %v34
    %55 = vmax.xlane.f32.xlu0 %v54
    %v56 = vpop.xlane.xlu0 %55
    %v57 = vmax.f32 %v35, %v36
    %58 = vmax.xlane.f32.xlu0 %v57
    %v59 = vpop.xlane.xlu0 %58
    %v60 = vmax.f32 %v37, %v38
    %61 = vmax.xlane.f32.xlu0 %v60
    %v62 = vpop.xlane.xlu0 %61
    %v63 = vsub.f32 %v23, %v41
    %v64 = vsub.f32 %v24, %v41
    %v65 = vsub.f32 %v25, %v44
    %v66 = vsub.f32 %v26, %v44
    %v67 = vsub.f32 %v27, %v47
    %v68 = vsub.f32 %v28, %v47
    %v69 = vsub.f32 %v29, %v50
    %v70 = vsub.f32 %v30, %v50
    %v71 = vsub.f32 %v31, %v53
    %v72 = vsub.f32 %v32, %v53
    %v73 = vsub.f32 %v33, %v56
    %v74 = vsub.f32 %v34, %v56
    %v75 = vsub.f32 %v35, %v59
    %v76 = vsub.f32 %v36, %v59
    %v77 = vsub.f32 %v37, %v62
    %v78 = vsub.f32 %v38, %v62
    %v79 = vmul.f32 %v63, 1.442695
    %v80 = vpow.pop %v79
    %v81 = vmul.f32 %v64, 1.442695
    %v82 = vpow.pop %v81
    %v83 = vmul.f32 %v65, 1.442695
    %v84 = vpow.pop %v83
    %v85 = vmul.f32 %v66, 1.442695
    %v86 = vpow.pop %v85
    %v87 = vmul.f32 %v67, 1.442695
    %v88 = vpow.pop %v87
    %v89 = vmul.f32 %v68, 1.442695
    %v90 = vpow.pop %v89
    %v91 = vmul.f32 %v69, 1.442695
    %v92 = vpow.pop %v91
    %v93 = vmul.f32 %v70, 1.442695
    %v94 = vpow.pop %v93
    %v95 = vmul.f32 %v71, 1.442695
    %v96 = vpow.pop %v95
    %v97 = vmul.f32 %v72, 1.442695
    %v98 = vpow.pop %v97
    %v99 = vmul.f32 %v73, 1.442695
    %v100 = vpow.pop %v99
    %v101 = vmul.f32 %v74, 1.442695
    %v102 = vpow.pop %v101
    %v103 = vmul.f32 %v75, 1.442695
    %v104 = vpow.pop %v103
    %v105 = vmul.f32 %v76, 1.442695
    %v106 = vpow.pop %v105
    %v107 = vmul.f32 %v77, 1.442695
    %v108 = vpow.pop %v107
    %v109 = vmul.f32 %v78, 1.442695
    %v110 = vpow.pop %v109
    %v111 = vadd.f32 %v80, %v82
    %112 = vadd.xlane.f32.xlu0 %v111
    %v113 = vpop.xlane.xlu0 %112
    %v114 = vadd.f32 %v84, %v86
    %115 = vadd.xlane.f32.xlu0 %v114
    %v116 = vpop.xlane.xlu0 %115
    %v117 = vadd.f32 %v88, %v90
    %118 = vadd.xlane.f32.xlu0 %v117
    %v119 = vpop.xlane.xlu0 %118
    %v120 = vadd.f32 %v92, %v94
    %121 = vadd.xlane.f32.xlu0 %v120
    %v122 = vpop.xlane.xlu0 %121
    %v123 = vadd.f32 %v96, %v98
    %124 = vadd.xlane.f32.xlu0 %v123
    %v125 = vpop.xlane.xlu0 %124
    %v126 = vadd.f32 %v100, %v102
    %127 = vadd.xlane.f32.xlu0 %v126
    %v128 = vpop.xlane.xlu0 %127
    %v129 = vadd.f32 %v104, %v106
    %130 = vadd.xlane.f32.xlu0 %v129
    %v131 = vpop.xlane.xlu0 %130
    %v132 = vadd.f32 %v108, %v110
    %133 = vadd.xlane.f32.xlu0 %v132
    %v134 = vpop.xlane.xlu0 %133
    %v135 = vrcp.pop %v113
    %v136 = vrcp.pop %v116
    %v137 = vrcp.pop %v119
    %v138 = vrcp.pop %v122
    %v139 = vrcp.pop %v125
    %v140 = vrcp.pop %v128
    %v141 = vrcp.pop %v131
    %v142 = vrcp.pop %v134
    %v143 = vmul.f32 %v113, %v135
    %v144 = vmul.f32 %v116, %v136
    %v145 = vmul.f32 %v119, %v137
    %v146 = vmul.f32 %v122, %v138
    %v147 = vmul.f32 %v125, %v139
    %v148 = vmul.f32 %v128, %v140
    %v149 = vmul.f32 %v131, %v141
    %v150 = vmul.f32 %v134, %v142
    %v151 = vsub.f32 2.0, %v143
    %v152 = vsub.f32 2.0, %v144
    %v153 = vsub.f32 2.0, %v145
    %v154 = vsub.f32 2.0, %v146
    %v155 = vsub.f32 2.0, %v147
    %v156 = vsub.f32 2.0, %v148
    %v157 = vsub.f32 2.0, %v149
    %v158 = vsub.f32 2.0, %v150
    %v159 = vmul.f32 %v135, %v151
    %v160 = vmul.f32 %v136, %v152
    %v161 = vmul.f32 %v137, %v153
    %v162 = vmul.f32 %v138, %v154
    %v163 = vmul.f32 %v139, %v155
    %v164 = vmul.f32 %v140, %v156
    %v165 = vmul.f32 %v141, %v157
    %v166 = vmul.f32 %v142, %v158
    %v167 = vmul.f32 %v80, %v159
    %v168 = vmul.f32 %v82, %v159
    %v169 = vmul.f32 %v84, %v160
    %v170 = vmul.f32 %v86, %v160
    %v171 = vmul.f32 %v88, %v161
    %v172 = vmul.f32 %v90, %v161
    %v173 = vmul.f32 %v92, %v162
    %v174 = vmul.f32 %v94, %v162
    %v175 = vmul.f32 %v96, %v163
    %v176 = vmul.f32 %v98, %v163
    %v177 = vmul.f32 %v100, %v164
    %v178 = vmul.f32 %v102, %v164
    %v179 = vmul.f32 %v104, %v165
    %v180 = vmul.f32 %v106, %v165
    %v181 = vmul.f32 %v108, %v166
    %v182 = vmul.f32 %v110, %v166
    %183 = vst [vmem:[#allocation5] sm:$0xff] %v167
    %184 = vst [vmem:[#allocation5 + $0x8] sm:$0xff] %v168
    %185 = vst [vmem:[#allocation5 + $0x10] sm:$0xff] %v169
    %186 = vst [vmem:[#allocation5 + $0x18] sm:$0xff] %v170
    %187 = vst [vmem:[#allocation5 + $0x20] sm:$0xff] %v171
    %188 = vst [vmem:[#allocation5 + $0x28] sm:$0xff] %v172
    %189 = vst [vmem:[#allocation5 + $0x30] sm:$0xff] %v173
    %190 = vst [vmem:[#allocation5 + $0x38] sm:$0xff] %v174
    %191 = vst [vmem:[#allocation5 + $0x40] sm:$0xff] %v175
    %192 = vst [vmem:[#allocation5 + $0x48] sm:$0xff] %v176
    %193 = vst [vmem:[#allocation5 + $0x50] sm:$0xff] %v177
    %194 = vst [vmem:[#allocation5 + $0x58] sm:$0xff] %v178
    %195 = vst [vmem:[#allocation5 + $0x60] sm:$0xff] %v179
    %196 = vst [vmem:[#allocation5 + $0x68] sm:$0xff] %v180
    %197 = vst [vmem:[#allocation5 + $0x70] sm:$0xff] %v181
    %198 = vst [vmem:[#allocation5 + $0x78] sm:$0xff] %v182
    // Predicated region
    $region10: #{tpu_custom_call.1} parent=1 // pred_check
      _
    $region11: #{tpu_custom_call.1} parent=1 // pred_check_branch
      %200 = sbr.rel (0) target = $region13
    $region12: #{tpu_custom_call.1} parent=1 // pred_region
      %s202 = ssub.s32 2048, 2048
      %203 = vsyncadd [#allocation4], %s202
      %s204 = sshll.u32 [#allocation5], 4
      %s205 = int_to_ptr.vmem [resolvable:$true] %s204
      %210 = dma.vmem_to_hbm [thread:$0]  %s205, 2048, %s1, [#allocation4], 256, 256, 16
    $region13: #{tpu_custom_call.1} parent=1 // pred_fallthru
      _
    // Predicated region
    $region14: #{tpu_custom_call.1} parent=1 // pred_check
      _
    $region15: #{tpu_custom_call.1} parent=1 // pred_check_branch
      %212 = sbr.rel (0) target = $region17
    $region16: #{tpu_custom_call.1} parent=1 // pred_region
      %213 = dma.done [#allocation4], 2048
    $region17: #{tpu_custom_call.1} parent=1 // pred_fallthru
      _
    %214 = vsyncpa [#allocation3], 1
    %215 = vsyncpa [#allocation4], 1

</llo_original>
